<compile_context>
chip_gen: v5e
topology: v5e:2x2
jax: 0.10.0
libtpu: 0.0.40
codegen_flags: <defaults>
</compile_context>

<pallas_src>
import functools

import jax
import jax.numpy as jnp
from jax.experimental import pallas as pl
from jax.experimental.pallas import tpu as pltpu

IN_DIM = 8
HID_DIM = 64
PACK = 2                       # samples packed per lane-dense row
PACK_IN = PACK * IN_DIM        # 16
PACK_HID = PACK * HID_DIM      # 128 -> full lane width, unmasked stores
MAX_TILE_ROWS = 2048           # packed rows per grid step (= 4096 samples / step)


def _round_up(x, m):
    return ((x + m - 1) // m) * m


def _mlp_kernel(x_ref, w1_ref, b1_ref, w2_ref, b2_ref, o_ref, *, bf16_tanh):
    # fc1 (MXU matmul, f32 accumulate) + tanh
    h = jnp.dot(x_ref[...], w1_ref[...], preferred_element_type=jnp.float32)
    h = h + b1_ref[...]
    if bf16_tanh:
        # bf16 EUP path (v6e/v7x): ~2x transcendental throughput, ~1e-3 abs error.
        h = jnp.tanh(h.astype(jnp.bfloat16)).astype(jnp.float32)
    else:
        h = jnp.tanh(h)
    # fc2 + tanh
    o = jnp.dot(h, w2_ref[...], preferred_element_type=jnp.float32)
    o = o + b2_ref[...]
    if bf16_tanh:
        o = jnp.tanh(o.astype(jnp.bfloat16))
    else:
        o = jnp.tanh(o)
    o_ref[...] = o.astype(o_ref.dtype)


def _block_diag2(w):
    """[[W, 0], [0, W]] so packed rows [x0 | x1] map to [x0@W | x1@W]."""
    k, n = w.shape
    z = jnp.zeros((k, n), w.dtype)
    top = jnp.concatenate([w, z], axis=1)
    bot = jnp.concatenate([z, w], axis=1)
    return jnp.concatenate([top, bot], axis=0)


def state_processor(x, w1, b1, w2, b2, *, bf16_tanh=False, out_dtype=jnp.float32):
    """x: [B, 8] f32; w1: [8, 64]; b1: [1, 64]; w2: [64, 64]; b2: [1, 64]."""
    B = x.shape[0]
    b1 = b1.reshape(1, HID_DIM)
    b2 = b2.reshape(1, HID_DIM)

    # Lane-dense packing of the batch: 2 samples per row.
    # Pad only to 8-row (16-sample) granularity; ragged last grid block is masked.
    Bp = -(-B // PACK)                                   # packed rows needed
    Bp_pad = _round_up(Bp, 8)
    pad_rows = Bp_pad * PACK - B                         # <= 15 samples
    if pad_rows:
        x = jnp.pad(x, ((0, pad_rows), (0, 0)))
    x_packed = x.reshape(Bp_pad, PACK_IN)                # free reshape (row-major)

    w1p = _block_diag2(w1)                               # (16, 128)
    w2p = _block_diag2(w2)                               # (128, 128)
    b1p = jnp.concatenate([b1, b1], axis=-1)             # (1, 128)
    b2p = jnp.concatenate([b2, b2], axis=-1)             # (1, 128)

    # Biggest tile that fits the budget, but keep >= 2 grid steps when there is
    # enough work so both v7x TensorCores get a share of the batch axis.
    tile = min(MAX_TILE_ROWS, max(8, _round_up(-(-Bp_pad // 2), 8)))
    grid = (-(-Bp_pad // tile),)                         # ragged last block allowed
    const = lambda i: (0, 0)                             # weights stay VMEM-resident

    rows = Bp_pad * PACK                                 # rows actually processed
    flops = 2 * rows * (IN_DIM * HID_DIM + HID_DIM * HID_DIM)
    transcendentals = 2 * rows * HID_DIM
    bytes_accessed = (rows * IN_DIM * 4
                      + rows * HID_DIM * jnp.dtype(out_dtype).itemsize
                      + (w1p.size + w2p.size + b1p.size + b2p.size) * 4)

    out_packed = pl.pallas_call(
        functools.partial(_mlp_kernel, bf16_tanh=bf16_tanh),
        out_shape=jax.ShapeDtypeStruct((Bp_pad, PACK_HID), out_dtype),
        grid=grid,
        in_specs=[
            pl.BlockSpec((tile, PACK_IN), lambda i: (i, 0)),
            pl.BlockSpec((PACK_IN, PACK_HID), const),
            pl.BlockSpec((1, PACK_HID), const),
            pl.BlockSpec((PACK_HID, PACK_HID), const),
            pl.BlockSpec((1, PACK_HID), const),
        ],
        out_specs=pl.BlockSpec((tile, PACK_HID), lambda i: (i, 0)),
        compiler_params=pltpu.CompilerParams(
            dimension_semantics=("parallel",),
            vmem_limit_bytes=32 * 1024 * 1024,
        ),
        cost_estimate=pl.CostEstimate(
            flops=flops,
            transcendentals=transcendentals,
            bytes_accessed=bytes_accessed,
        ),
    )(x_packed, w1p, b1p, w2p, b2p)

    # Unpack: (Bp_pad, 128) -> (2*Bp_pad, 64).  Free reshape; the [:B] slice (an extra
    # HBM pass) is only emitted when the batch is unaligned.
    out = out_packed.reshape(Bp_pad * PACK, HID_DIM)
    if pad_rows:
        out = out[:B]
    return out


def init_params(key):
    """Deterministic init mimicking PyTorch nn.Linear defaults (uniform +/- 1/sqrt(fan_in))."""
    k1, k2, k3, k4 = jax.random.split(key, 4)
    bound1 = 1.0 / jnp.sqrt(IN_DIM)
    bound2 = 1.0 / jnp.sqrt(HID_DIM)
    # PyTorch weight is [out, in]; we store transposed [in, out] for the kernel.
    w1 = jax.random.uniform(k1, (IN_DIM, HID_DIM), jnp.float32, -bound1, bound1)
    b1 = jax.random.uniform(k2, (1, HID_DIM), jnp.float32, -bound1, bound1)
    w2 = jax.random.uniform(k3, (HID_DIM, HID_DIM), jnp.float32, -bound2, bound2)
    b2 = jax.random.uniform(k4, (1, HID_DIM), jnp.float32, -bound2, bound2)
    return w1, b1, w2, b2


if __name__ == "__main__":
    key = jax.random.PRNGKey(0)
    kx, kp = jax.random.split(key)
    w1, b1, w2, b2 = init_params(kp)

    ok = True
    # 8: aligned small batch; 13: odd/padded batch; 33: multi-step grid + ragged last block.
    for batch in (8, 13, 33):
        x = jax.random.normal(jax.random.fold_in(kx, batch), (batch, IN_DIM), jnp.float32)
        out = state_processor(x, w1, b1, w2, b2)
        out = jax.block_until_ready(out)

        # Reference check in plain JAX.
        ref = jnp.tanh(jnp.tanh(x @ w1 + b1) @ w2 + b2)
        ok &= out.shape == (batch, HID_DIM)
        ok &= bool(jnp.allclose(out, ref, atol=1e-5, rtol=1e-5))

    # NOTE: the bf16_tanh=True fast path (v6e/v7x) is opt-in and not exercised here to
    # keep the exact-f32 check and v5e compatibility.

    assert ok
    print("KERNEL_OK")
</pallas_src>

<mosaic_0001>
module attributes {stable_mosaic.version = 11 : i64} {
  func.func @_mlp_kernel(%arg0: i32, %arg1: memref<8x16xf32, #tpu.memory_space<vmem>>, %arg2: memref<16x128xf32, #tpu.memory_space<vmem>>, %arg3: memref<1x128xf32, #tpu.memory_space<vmem>>, %arg4: memref<128x128xf32, #tpu.memory_space<vmem>>, %arg5: memref<1x128xf32, #tpu.memory_space<vmem>>, %arg6: memref<8x128xf32, #tpu.memory_space<vmem>>) attributes {dimension_semantics = [#tpu.dimension_semantics<parallel>], iteration_bounds = array<i64: 1>, scalar_prefetch = 0 : i64, scratch_operands = 0 : i64, tpu.core_type = #tpu.core_type<tc>, window_params = [{transform_indices = @transform_0, window_bounds = array<i64: 8, 16>}, {pipeline_mode = #tpu.pipeline_mode<synchronous>, transform_indices = @transform_1, window_bounds = array<i64: 16, 128>}, {pipeline_mode = #tpu.pipeline_mode<synchronous>, transform_indices = @transform_2, window_bounds = array<i64: 1, 128>}, {pipeline_mode = #tpu.pipeline_mode<synchronous>, transform_indices = @transform_3, window_bounds = array<i64: 128, 128>}, {pipeline_mode = #tpu.pipeline_mode<synchronous>, transform_indices = @transform_4, window_bounds = array<i64: 1, 128>}, {transform_indices = @transform_5, window_bounds = array<i64: 8, 128>}]} {
    %c0 = arith.constant 0 : index
    %c0_0 = arith.constant 0 : index
    %0 = vector.load %arg1[%c0, %c0_0] : memref<8x16xf32, #tpu.memory_space<vmem>>, vector<8x16xf32>
    %c0_1 = arith.constant 0 : index
    %c0_2 = arith.constant 0 : index
    %1 = vector.load %arg2[%c0_1, %c0_2] : memref<16x128xf32, #tpu.memory_space<vmem>>, vector<16x128xf32>
    %cst = arith.constant dense<0.000000e+00> : vector<8x128xf32>
    %2 = tpu.matmul %0, %1, %cst {dimension_numbers = #tpu.dot_dimension_numbers<[1], [0], [0], [1], [0, 0, 1, 1], [], []>} : vector<8x16xf32>, vector<16x128xf32>, vector<8x128xf32> -> vector<8x128xf32>
    %c0_3 = arith.constant 0 : index
    %c0_4 = arith.constant 0 : index
    %3 = vector.load %arg3[%c0_3, %c0_4] : memref<1x128xf32, #tpu.memory_space<vmem>>, vector<1x128xf32>
    %4 = vector.broadcast %3 : vector<1x128xf32> to vector<8x128xf32>
    %5 = arith.addf %2, %4 : vector<8x128xf32>
    %6 = math.tanh %5 : vector<8x128xf32>
    %c0_5 = arith.constant 0 : index
    %c0_6 = arith.constant 0 : index
    %7 = vector.load %arg4[%c0_5, %c0_6] : memref<128x128xf32, #tpu.memory_space<vmem>>, vector<128x128xf32>
    %cst_7 = arith.constant dense<0.000000e+00> : vector<8x128xf32>
    %8 = tpu.matmul %6, %7, %cst_7 {dimension_numbers = #tpu.dot_dimension_numbers<[1], [0], [0], [1], [0, 0, 1, 1], [], []>} : vector<8x128xf32>, vector<128x128xf32>, vector<8x128xf32> -> vector<8x128xf32>
    %c0_8 = arith.constant 0 : index
    %c0_9 = arith.constant 0 : index
    %9 = vector.load %arg5[%c0_8, %c0_9] : memref<1x128xf32, #tpu.memory_space<vmem>>, vector<1x128xf32>
    %10 = vector.broadcast %9 : vector<1x128xf32> to vector<8x128xf32>
    %11 = arith.addf %8, %10 : vector<8x128xf32>
    %12 = math.tanh %11 : vector<8x128xf32>
    %c0_10 = arith.constant 0 : index
    %c0_11 = arith.constant 0 : index
    %13 = vector.load %arg6[%c0_10, %c0_11] : memref<8x128xf32, #tpu.memory_space<vmem>>, vector<8x128xf32>
    tpu.vector_store %arg6[%c0_10, %c0_11], %12 {strides = array<i32>} : memref<8x128xf32, #tpu.memory_space<vmem>>, vector<8x128xf32>,
    return
  }
  func.func @transform_0(%arg0: i32) -> (i32, i32) {
    %c0_i32 = arith.constant 0 : i32
    %c0_i32_0 = arith.constant 0 : i32
    return %arg0, %c0_i32 : i32, i32
  }
  func.func @transform_1(%arg0: i32) -> (i32, i32) {
    %c0_i32 = arith.constant 0 : i32
    %c0_i32_0 = arith.constant 0 : i32
    %c0_i32_1 = arith.constant 0 : i32
    return %c0_i32, %c0_i32_0 : i32, i32
  }
  func.func @transform_2(%arg0: i32) -> (i32, i32) {
    %c0_i32 = arith.constant 0 : i32
    %c0_i32_0 = arith.constant 0 : i32
    %c0_i32_1 = arith.constant 0 : i32
    return %c0_i32, %c0_i32_0 : i32, i32
  }
  func.func @transform_3(%arg0: i32) -> (i32, i32) {
    %c0_i32 = arith.constant 0 : i32
    %c0_i32_0 = arith.constant 0 : i32
    %c0_i32_1 = arith.constant 0 : i32
    return %c0_i32, %c0_i32_0 : i32, i32
  }
  func.func @transform_4(%arg0: i32) -> (i32, i32) {
    %c0_i32 = arith.constant 0 : i32
    %c0_i32_0 = arith.constant 0 : i32
    %c0_i32_1 = arith.constant 0 : i32
    return %c0_i32, %c0_i32_0 : i32, i32
  }
  func.func @transform_5(%arg0: i32) -> (i32, i32) {
    %c0_i32 = arith.constant 0 : i32
    %c0_i32_0 = arith.constant 0 : i32
    return %arg0, %c0_i32 : i32, i32
  }
}

</mosaic_0001>

<llo_original>
// kernel: tpu_custom_call.1
$region0: #{tpu_custom_call.1}
  #allocation0 [shape = 'u32[]', space=smem, size = 0x4, offset = 0x4, fixed_abs, tag = 'smem constant byte address 0x4 - core index']
  #allocation1 [shape = 'u32[72,128]{1,0:T(1,128)}', space=vmem, size = 0x9000, scoped, tag = 'internal scratch']
  %s0 = inlined_call_operand.hbm [shape: f32[8,16], index: 0, kind: input, shape index: {}]
  %s1 = inlined_call_operand.hbm [shape: f32[16,128], index: 1, kind: input, shape index: {}]
  %s2 = inlined_call_operand.vmem [shape: f32[1,128], index: 2, kind: input, shape index: {}]
  %s3 = inlined_call_operand.hbm [shape: f32[128,128], index: 3, kind: input, shape index: {}]
  %s4 = inlined_call_operand.vmem [shape: f32[1,128], index: 4, kind: input, shape index: {}]
  %s5 = inlined_call_operand.hbm [shape: f32[8,128], index: 5, kind: output, shape index: {}]
  %s6 = sld [smem:[#allocation0]]
  $region42: #{tpu_custom_call.1} parent=0
    _
  %s8 = ssub.s32 1, %s6
  %s9 = scalar_select 0, %s8, %s6
  $region1: #{tpu_custom_call.1} parent=0
    #allocation2 [shape = 'u8[4096]{0}', space=vmem, size = 0x1000, scoped, tag = 'input window, operand 0, single buffered']
    #allocation3 [shape = 's32[1]{0}', space=sflag, size = 0x4, scoped, tag = 'scoped memory for tpu_custom_call.1']
    #allocation4 [shape = 's32[1]{0}', space=sflag, size = 0x4, scoped, tag = 'scoped memory for tpu_custom_call.1']
    #allocation5 [shape = 'u8[8192]{0}', space=vmem, size = 0x2000, scoped, tag = 'input window, operand 1, single buffered']
    #allocation6 [shape = 's32[1]{0}', space=sflag, size = 0x4, scoped, tag = 'scoped memory for tpu_custom_call.1']
    #allocation7 [shape = 'u8[65536]{0}', space=vmem, size = 0x10000, scoped, tag = 'input window, operand 3, single buffered']
    #allocation8 [shape = 'u8[4096]{0}', space=vmem, size = 0x1000, scoped, tag = 'output window, operand 0, single buffered']
    %10 = vsyncpa [#allocation3], 0
    %11 = vsyncpa [#allocation6], 0
    %12 = vsyncpa [#allocation4], 0
    // Predicated region
    $region2: #{tpu_custom_call.1} parent=1 // pred_check
      _
    $region3: #{tpu_custom_call.1} parent=1 // pred_check_branch
      %14 = sbr.rel (0) target = $region5
    $region4: #{tpu_custom_call.1} parent=1 // pred_region
      %16 = vsyncadd [#allocation3], 0
      %s18 = sshll.u32 %s0, 4
      %s19 = int_to_ptr.hbm [resolvable:$true] %s18
      %s20 = sshll.u32 [#allocation2], 4
      %s21 = int_to_ptr.vmem [resolvable:$true] %s20
      %23 = dma.hbm_to_vmem [thread:$0]  %s19, 128, %s21, [#allocation3]
    $region5: #{tpu_custom_call.1} parent=1 // pred_fallthru
      _
    // Predicated region
    $region6: #{tpu_custom_call.1} parent=1 // pred_check
      _
    $region7: #{tpu_custom_call.1} parent=1 // pred_check_branch
      %25 = sbr.rel (0) target = $region9
    $region8: #{tpu_custom_call.1} parent=1 // pred_region
      %27 = vsyncadd [#allocation6], 0
      %s28 = sshll.u32 %s1, 4
      %s29 = int_to_ptr.hbm [resolvable:$true] %s28
      %s30 = sshll.u32 [#allocation5], 4
      %s31 = int_to_ptr.vmem [resolvable:$true] %s30
      %36 = dma.hbm_to_vmem [thread:$0]  %s29, 256, %s31, [#allocation6], 128, 128, 8
    $region9: #{tpu_custom_call.1} parent=1 // pred_fallthru
      _
    // Predicated region
    $region10: #{tpu_custom_call.1} parent=1 // pred_check
      _
    $region11: #{tpu_custom_call.1} parent=1 // pred_check_branch
      %38 = sbr.rel (0) target = $region13
    $region12: #{tpu_custom_call.1} parent=1 // pred_region
      _
    $region13: #{tpu_custom_call.1} parent=1 // pred_fallthru
      _
    // Predicated region
    $region14: #{tpu_custom_call.1} parent=1 // pred_check
      _
    $region15: #{tpu_custom_call.1} parent=1 // pred_check_branch
      %40 = sbr.rel (0) target = $region17
    $region16: #{tpu_custom_call.1} parent=1 // pred_region
      %42 = vsyncadd [#allocation6], 0
      %s43 = sshll.u32 %s3, 4
      %s44 = int_to_ptr.hbm [resolvable:$true] %s43
      %s45 = sshll.u32 [#allocation7], 4
      %s46 = int_to_ptr.vmem [resolvable:$true] %s45
      %51 = dma.hbm_to_vmem [thread:$0]  %s44, 2048, %s46, [#allocation6], 128, 128, 8
    $region17: #{tpu_custom_call.1} parent=1 // pred_fallthru
      _
    // Predicated region
    $region18: #{tpu_custom_call.1} parent=1 // pred_check
      _
    $region19: #{tpu_custom_call.1} parent=1 // pred_check_branch
      %53 = sbr.rel (0) target = $region21
    $region20: #{tpu_custom_call.1} parent=1 // pred_region
      _
    $region21: #{tpu_custom_call.1} parent=1 // pred_fallthru
      _
    // Predicated region
    $region22: #{tpu_custom_call.1} parent=1 // pred_check
      _
    $region23: #{tpu_custom_call.1} parent=1 // pred_check_branch
      %55 = sbr.rel (0) target = $region25
    $region24: #{tpu_custom_call.1} parent=1 // pred_region
      %57 = dma.done [#allocation3], 128
    $region25: #{tpu_custom_call.1} parent=1 // pred_fallthru
      _
    // Predicated region
    $region26: #{tpu_custom_call.1} parent=1 // pred_check
      _
    $region27: #{tpu_custom_call.1} parent=1 // pred_check_branch
      %59 = sbr.rel (0) target = $region29
    $region28: #{tpu_custom_call.1} parent=1 // pred_region
      %61 = dma.done [#allocation6], 256
    $region29: #{tpu_custom_call.1} parent=1 // pred_fallthru
      _
    // Predicated region
    $region30: #{tpu_custom_call.1} parent=1 // pred_check
      _
    $region31: #{tpu_custom_call.1} parent=1 // pred_check_branch
      %63 = sbr.rel (0) target = $region33
    $region32: #{tpu_custom_call.1} parent=1 // pred_region
      %65 = dma.done [#allocation6], 2048
    $region33: #{tpu_custom_call.1} parent=1 // pred_fallthru
      _
    %v66 = vld [vmem:[#allocation2] sm:$0xff]
    %v67 = vld [vmem:[#allocation5] sm:$0xff]
    %v68 = vld [vmem:[#allocation5 + $0x8] sm:$0xff]
    %v69 = vld [vmem:[%s2] sm:$0x1]
    %v71 = vperm.slane %v69, 0
    %vm73 = vcmask 130048
    %v75 = vsel %vm73, %v66, 0
    %77 = vmatpush.msra.mxu0 0.0
    %78 = vmatpush.msra.mxu0 0.0
    %79 = vmatpush.msra.mxu0 0.0
    %80 = vmatpush.msra.mxu0 0.0
    %81 = vmatpush.msra.mxu0 0.0
    %82 = vmatpush.msra.mxu0 0.0
    %83 = vmatpush.msra.mxu0 0.0
    %84 = vmatpush.msra.mxu0 0.0
    %85 = vmatpush.msra.mxu0 0.0
    %86 = vmatpush.msra.mxu0 0.0
    %87 = vmatpush.msra.mxu0 0.0
    %88 = vmatpush.msra.mxu0 0.0
    %89 = vmatpush.msra.mxu0 0.0
    %90 = vmatpush.msra.mxu0 0.0
    %91 = vmatpush.msra.mxu0 %v68
    %92 = vmatpush.msra.mxu0 %v67
    %93 = vmatmul.f32.gmra.mxu0 %v75
    %v94 = vpop.f32.mrf.mxu0
    %v95 = vadd.f32 %v71, %v94
    %96 = vdwg.mxu0
    %v97 = vtanh.pop %v95
    %v98 = vld [vmem:[#allocation7] sm:$0xff]
    %v99 = vld [vmem:[#allocation7 + $0x8] sm:$0xff]
    %v100 = vld [vmem:[#allocation7 + $0x10] sm:$0xff]
    %v101 = vld [vmem:[#allocation7 + $0x18] sm:$0xff]
    %v102 = vld [vmem:[#allocation7 + $0x20] sm:$0xff]
    %v103 = vld [vmem:[#allocation7 + $0x28] sm:$0xff]
    %v104 = vld [vmem:[#allocation7 + $0x30] sm:$0xff]
    %v105 = vld [vmem:[#allocation7 + $0x38] sm:$0xff]
    %v106 = vld [vmem:[#allocation7 + $0x40] sm:$0xff]
    %v107 = vld [vmem:[#allocation7 + $0x48] sm:$0xff]
    %v108 = vld [vmem:[#allocation7 + $0x50] sm:$0xff]
    %v109 = vld [vmem:[#allocation7 + $0x58] sm:$0xff]
    %v110 = vld [vmem:[#allocation7 + $0x60] sm:$0xff]
    %v111 = vld [vmem:[#allocation7 + $0x68] sm:$0xff]
    %v112 = vld [vmem:[#allocation7 + $0x70] sm:$0xff]
    %v113 = vld [vmem:[#allocation7 + $0x78] sm:$0xff]
    %v114 = vld [vmem:[%s4] sm:$0x1]
    %v116 = vperm.slane %v114, 0
    %118 = vmatpush.msra.mxu0 %v113
    %119 = vmatpush.msra.mxu0 %v112
    %120 = vmatpush.msra.mxu0 %v111
    %121 = vmatpush.msra.mxu0 %v110
    %122 = vmatpush.msra.mxu0 %v109
    %123 = vmatpush.msra.mxu0 %v108
    %124 = vmatpush.msra.mxu0 %v107
    %125 = vmatpush.msra.mxu0 %v106
    %126 = vmatpush.msra.mxu0 %v105
    %127 = vmatpush.msra.mxu0 %v104
    %128 = vmatpush.msra.mxu0 %v103
    %129 = vmatpush.msra.mxu0 %v102
    %130 = vmatpush.msra.mxu0 %v101
    %131 = vmatpush.msra.mxu0 %v100
    %132 = vmatpush.msra.mxu0 %v99
    %133 = vmatpush.msra.mxu0 %v98
    %134 = vmatmul.f32.gmra.mxu0 %v97
    %v135 = vpop.f32.mrf.mxu0
    %v136 = vadd.f32 %v116, %v135
    %137 = vdwg.mxu0
    %v138 = vtanh.pop %v136
    %139 = vst [vmem:[#allocation8] sm:$0xff] %v138
    // Predicated region
    $region34: #{tpu_custom_call.1} parent=1 // pred_check
      _
    $region35: #{tpu_custom_call.1} parent=1 // pred_check_branch
      %141 = sbr.rel (0) target = $region37
    $region36: #{tpu_custom_call.1} parent=1 // pred_region
      %143 = vsyncadd [#allocation4], 0
      %s145 = sshll.u32 [#allocation8], 4
      %s146 = int_to_ptr.vmem [resolvable:$true] %s145
      %s147 = sshll.u32 %s5, 4
      %s148 = int_to_ptr.hbm [resolvable:$true] %s147
      %150 = dma.vmem_to_hbm [thread:$0]  %s146, 128, %s148, [#allocation4]
    $region37: #{tpu_custom_call.1} parent=1 // pred_fallthru
      _
    // Predicated region
    $region38: #{tpu_custom_call.1} parent=1 // pred_check
      _
    $region39: #{tpu_custom_call.1} parent=1 // pred_check_branch
      %152 = sbr.rel (0) target = $region41
    $region40: #{tpu_custom_call.1} parent=1 // pred_region
      %154 = dma.done [#allocation4], 128
    $region41: #{tpu_custom_call.1} parent=1 // pred_fallthru
      _
    %155 = vsyncpa [#allocation3], 1
    %156 = vsyncpa [#allocation6], 1
    %157 = vsyncpa [#allocation4], 1

</llo_original>
